<compile_context>
chip_gen: v7x
topology: tpu7x:2x2x1
jax: 0.10.0
libtpu: 0.0.40
codegen_flags: <defaults>
</compile_context>

<pallas_src>
import functools
import math

import jax
import jax.numpy as jnp
from jax.experimental import pallas as pl
from jax.experimental.pallas import tpu as pltpu

_LANE = 128
_MIN_FAT_ROWS = 64          # keep at least this many rows per block when column-tiling
_MAX_TILE_COLS = 8192       # caps the unrolled 128-wide strip fold at 64 steps
_PACK_TARGET_LANES = 1024   # target packed-row width for the small-spatial path
_MAX_PACK_GROUP = 64        # cap on rows folded into one packed row


def _round_up(x, m):
    return ((x + m - 1) // m) * m


def _sublanes(dtype):
    # 8 for f32, 16 for bf16, 32 for int8/fp8
    return max(8, 32 // jnp.dtype(dtype).itemsize)


def _lowest(dtype):
    """Identity element for max in `dtype` (python scalar, weakly typed)."""
    dtype = jnp.dtype(dtype)
    if jnp.issubdtype(dtype, jnp.floating):
        return float("-inf")
    return int(jnp.iinfo(dtype).min)


def _tpu_sizing():
    """(target_input_block_bytes, vmem_limit_bytes, num_tensorcores), best effort."""
    kind = ""
    try:
        kind = jax.devices()[0].device_kind.lower()
    except Exception:
        pass
    mib = 1024 * 1024
    if "v7" in kind or "7x" in kind:       # v7x: 64 MiB VMEM, 3.2 TB/s HBM, 2 TCs
        block, limit, cores = 8 * mib, 32 * mib, 2
    elif "v6" in kind:                     # v6e: 128 MiB VMEM, 1 TC
        block, limit, cores = 12 * mib, 48 * mib, 1
    elif "v5" in kind:                     # v5e/v5p: slow HBM, blocks past 4-8 MiB buy little
        block, limit, cores = 4 * mib, 32 * mib, 1
    elif "v2" in kind or "v3" in kind:     # small-VMEM legacy parts
        block, limit, cores = 2 * mib, 12 * mib, 1
    else:
        block, limit, cores = 4 * mib, 32 * mib, 1
    try:
        vmem = getattr(pltpu.get_tpu_info(), "vmem_capacity_bytes", None)
        if vmem:
            limit = min(limit, int(vmem) // 2)
    except Exception:
        pass
    return block, limit, cores


def _row_tile(rows, width_padded, itemsize, sublane, out_row_bytes, step_budget, cores):
    """Largest row tile whose double-buffered, PADDED (input + output) block
    footprint stays inside `step_budget`.  Rounded to the sublane multiple (or
    the full extent).  On 2-TensorCore parts the parallel row axis is forced to
    have at least two blocks so both cores get work."""
    per_row = 2 * itemsize * width_padded + out_row_bytes
    fixed = 2 * sublane * _LANE * itemsize            # output-block padding slack
    budget_rows = max(1, (step_budget - fixed) // per_row)
    if budget_rows >= rows:
        tile = rows
    else:
        tile = max(sublane, (budget_rows // sublane) * sublane)
    if cores >= 2 and rows >= 2 * sublane:
        tile = min(tile, _round_up((rows + 1) // 2, sublane))
    return min(tile, rows)


# ----------------------------------------------------------------------------
# In-kernel reduction helpers
# ----------------------------------------------------------------------------
def _fold_to_lane_row(x, lowest):
    """Per-row max of a 2-D tile, returned lane-dense as (1, n_rows).

    1) fold 128-wide lane strips with elementwise maxima (VPU only),
    2) one small (n_rows, 128) -> (128, n_rows) transpose (XLU),
    3) sublane reduction with keepdims (result stays lane-major).
    """
    r, w = x.shape
    nfull = w // _LANE
    if nfull == 0:
        acc = jnp.full((r, _LANE), lowest, x.dtype)
    else:
        acc = x[:, :_LANE]
        for j in range(1, nfull):
            acc = jnp.maximum(acc, x[:, j * _LANE:(j + 1) * _LANE])
    if w % _LANE:
        # Lane-aligned ragged tail: its per-row max, broadcast over the 128
        # accumulator lanes, cannot change any row's maximum.
        tail = jnp.max(x[:, nfull * _LANE:], axis=-1, keepdims=True)
        acc = jnp.maximum(acc, tail)
    rp = _round_up(r, 8)
    if rp != r:
        acc = jnp.concatenate(
            [acc, jnp.full((rp - r, _LANE), lowest, x.dtype)], axis=0)
    acc_t = jnp.transpose(acc)                       # (128, rp): sublane->lane relayout
    out = jnp.max(acc_t, axis=0, keepdims=True)      # (1, rp), lane-dense
    return out[:, :r] if rp != r else out


def _rowmax_kernel(x_ref, o_ref, *, lowest):
    """Whole reduction extent fits in a single block."""
    o_ref[...] = _fold_to_lane_row(x_ref[...], lowest)[None].astype(o_ref.dtype)


def _rowmax_coltiled_kernel(x_ref, o_ref, *, lowest, cols, tile_cols, ragged):
    """Reduction (column) axis tiled: accumulate directly into the resident
    output block (no scratch, max is exact in any dtype)."""
    k = pl.program_id(1)
    x = x_ref[...]
    if ragged:
        # Out-of-range lanes of the LAST column block hold stale VMEM; mask them
        # to the identity.  ~2 VPU ops per vreg, fully hidden under the block
        # DMA; on non-last blocks the bound >= tile_cols so the select is a no-op.
        lane_ids = jax.lax.broadcasted_iota(jnp.int32, x.shape, 1)
        x = jnp.where(lane_ids < cols - k * tile_cols, x, lowest)
    partial = _fold_to_lane_row(x, lowest)[None].astype(o_ref.dtype)

    @pl.when(k == 0)
    def _init():
        o_ref[...] = partial

    @pl.when(k > 0)
    def _acc():
        o_ref[...] = jnp.maximum(o_ref[...], partial)


def _packed_rowmax_kernel(x_ref, o_ref, *, seg_len, n_seg):
    """Small-spatial path: each kernel row holds n_seg consecutive original
    rows (segments of seg_len lanes).  Segmented max, output (tile_rows, n_seg)."""
    x = x_ref[...]
    segs = [
        jnp.max(x[:, g * seg_len:(g + 1) * seg_len], axis=-1, keepdims=True)
        for g in range(n_seg)
    ]
    o_ref[...] = jnp.concatenate(segs, axis=-1).astype(o_ref.dtype)


# ----------------------------------------------------------------------------
# Wrapper
# ----------------------------------------------------------------------------
def global_max_pool(x, *, target_block_bytes=None):
    """Equivalent of GlobalMaxPool.forward: max over the last two dims, keepdims."""
    if x.ndim < 2:
        raise ValueError("global_max_pool expects at least 2 dims (..., H, W)")
    *lead, h, w = x.shape
    rows = math.prod(lead) if lead else 1
    cols = h * w
    dtype = x.dtype
    out_shape = tuple(lead) + (1, 1)

    if cols == 1:
        # 1x1 spatial: the pool is the identity.
        return x.reshape(out_shape)

    itemsize = jnp.dtype(dtype).itemsize
    sublane = _sublanes(dtype)
    lowest = _lowest(dtype)

    gen_block, vmem_limit, cores = _tpu_sizing()
    if target_block_bytes is None:
        target_block_bytes = gen_block
    # Per-grid-step budget (double-buffered input + output blocks) with headroom
    # below the scoped-VMEM limit for Mosaic's internal scratch.
    step_budget = min(max(int(2.25 * target_block_bytes), 256 * 1024),
                      (vmem_limit * 3) // 4)

    x2d = x.reshape(rows, cols)
    compiler_params = dict(vmem_limit_bytes=vmem_limit)

    # ---- small-spatial path: pack G rows into the lane axis -----------------
    # C < 128 leaves most of every 128-lane vreg / 512 B VMEM line as padding.
    # Fold G leading rows into one kernel row ((R,C)->(R/G, G*C), a free
    # row-major reshape) and take a segmented max per packed row.
    if cols < _LANE and rows > 1:
        g_cap = min(_MAX_PACK_GROUP, _PACK_TARGET_LANES // cols, rows)
        group = 1
        for g in range(g_cap, 1, -1):
            if rows % g == 0:
                group = g
                break
        # TODO(synk): rows with no usable divisor (e.g. prime R) fall back to the
        # generic path; padding R would cost an extra HBM pass.
        if group > 1:
            p_rows = rows // group
            width = group * cols
            width_p = _round_up(width, _LANE)
            tile_rows = _row_tile(p_rows, width_p, itemsize, sublane,
                                  out_row_bytes=2 * _LANE * itemsize,
                                  step_budget=step_budget, cores=cores)
            out = pl.pallas_call(
                functools.partial(_packed_rowmax_kernel, seg_len=cols, n_seg=group),
                out_shape=jax.ShapeDtypeStruct((p_rows, group), dtype),
                grid_spec=pltpu.PrefetchScalarGridSpec(
                    num_scalar_prefetch=0,
                    grid=(pl.cdiv(p_rows, tile_rows),),
                    in_specs=[pl.BlockSpec((tile_rows, width), lambda i: (i, 0))],
                    out_specs=pl.BlockSpec((tile_rows, group), lambda i: (i, 0)),
                ),
                compiler_params=pltpu.CompilerParams(
                    dimension_semantics=("parallel",), **compiler_params),
            )(x2d.reshape(p_rows, width))
            # (p, g) row-major order matches the original row order exactly.
            return out.reshape(out_shape)

    # ---- generic path --------------------------------------------------------
    cols_p = _round_up(cols, _LANE)
    # Widest lane-aligned column tile that still leaves >= _MIN_FAT_ROWS rows in
    # the (padded, double-buffered) budget.
    col_cap = (step_budget // (2 * itemsize * _MIN_FAT_ROWS) // _LANE) * _LANE

    if cols_p <= min(_MAX_TILE_COLS, col_cap):
        # Whole reduction extent in one block (value-level masking of the lane
        # padding handles non-128-multiple C).
        tile_cols = cols
        tile_rows = _row_tile(rows, cols_p, itemsize, sublane,
                              out_row_bytes=2 * sublane * itemsize,
                              step_budget=step_budget, cores=cores)
        n_row_tiles = pl.cdiv(rows, tile_rows)
        grid = (n_row_tiles,)
        kernel = functools.partial(_rowmax_kernel, lowest=lowest)
        in_specs = [pl.BlockSpec((tile_rows, tile_cols), lambda i: (i, 0))]
        out_specs = pl.BlockSpec((1, 1, tile_rows), lambda i: (i, 0, 0))
        dim_sem = ("parallel",)
    else:
        tile_cols = max(_LANE, min(_MAX_TILE_COLS, col_cap))   # always < C here
        tile_rows = _row_tile(rows, tile_cols, itemsize, sublane,
                              out_row_bytes=2 * sublane * itemsize,
                              step_budget=step_budget, cores=cores)
        n_row_tiles = pl.cdiv(rows, tile_rows)
        grid = (n_row_tiles, pl.cdiv(cols, tile_cols))
        kernel = functools.partial(
            _rowmax_coltiled_kernel, lowest=lowest, cols=cols, tile_cols=tile_cols,
            ragged=(cols % tile_cols != 0))
        in_specs = [pl.BlockSpec((tile_rows, tile_cols), lambda i, k: (i, k))]
        out_specs = pl.BlockSpec((1, 1, tile_rows), lambda i, k: (i, 0, 0))
        dim_sem = ("parallel", "arbitrary")

    out = pl.pallas_call(
        kernel,
        out_shape=jax.ShapeDtypeStruct((n_row_tiles, 1, tile_rows), dtype),
        grid_spec=pltpu.PrefetchScalarGridSpec(
            num_scalar_prefetch=0,
            grid=grid,
            in_specs=in_specs,
            out_specs=out_specs,
        ),
        compiler_params=pltpu.CompilerParams(
            dimension_semantics=dim_sem, **compiler_params),
    )(x2d)

    # Lane-dense (n_row_tiles, 1, tile_rows) result; only the tail of the last
    # (possibly partial) tile is garbage -> slice it off.
    return out.reshape(-1)[:rows].reshape(out_shape)


def _reference(x):
    return jnp.max(jnp.max(x, axis=-1, keepdims=True), axis=-2, keepdims=True)


if __name__ == "__main__":
    key = jax.random.PRNGKey(0)
    ok = True

    # 1) NCHW, 16x16 spatial: single-block path, C multiple of 128.
    x = jax.random.normal(key, (2, 4, 16, 16), dtype=jnp.float32)
    out = global_max_pool(x)
    jax.block_until_ready(out)
    ok &= out.shape == (2, 4, 1, 1) and bool(jnp.allclose(out, _reference(x)))

    # 2) 50x50 spatial: single-block path with a NON-128-multiple reduction
    #    width (exercises the value-level lane masking + ragged strip fold).
    x2 = jax.random.normal(jax.random.PRNGKey(0), (2, 4, 50, 50), dtype=jnp.float32)
    out2 = global_max_pool(x2)
    jax.block_until_ready(out2)
    ok &= out2.shape == (2, 4, 1, 1) and bool(jnp.allclose(out2, _reference(x2)))

    # 3) Same shape with a tiny block budget: column-tiled path with a ragged
    #    last column block and the resident-output accumulator.
    out3 = global_max_pool(x2, target_block_bytes=64 * 1024)
    jax.block_until_ready(out3)
    ok &= out3.shape == (2, 4, 1, 1) and bool(jnp.allclose(out3, _reference(x2)))

    # 4) 7x7 spatial (C=49 < 128): row-packing path (8 rows folded per lane row).
    x4 = jax.random.normal(jax.random.PRNGKey(0), (2, 4, 7, 7), dtype=jnp.float32)
    out4 = global_max_pool(x4)
    jax.block_until_ready(out4)
    ok &= out4.shape == (2, 4, 1, 1) and bool(jnp.allclose(out4, _reference(x4)))

    # 5) Bigger packed case: 80 rows folded 20-at-a-time, several packed rows.
    x5 = jax.random.normal(jax.random.PRNGKey(0), (8, 10, 7, 7), dtype=jnp.float32)
    out5 = global_max_pool(x5)
    jax.block_until_ready(out5)
    ok &= out5.shape == (8, 10, 1, 1) and bool(jnp.allclose(out5, _reference(x5)))

    assert ok, "mismatch vs reference"
    print("KERNEL_OK")
</pallas_src>

<mosaic_0001>
module attributes {stable_mosaic.version = 11 : i64} {
  func.func @_rowmax_kernel(%arg0: i32, %arg1: memref<8x256xf32, #tpu.memory_space<vmem>>, %arg2: memref<1x1x8xf32, #tpu.memory_space<vmem>>) attributes {dimension_semantics = [#tpu.dimension_semantics<parallel>], iteration_bounds = array<i64: 1>, scalar_prefetch = 0 : i64, scratch_operands = 0 : i64, tpu.core_type = #tpu.core_type<tc>, window_params = [{transform_indices = @transform_0, window_bounds = array<i64: 8, 256>}, {transform_indices = @transform_1, window_bounds = array<i64: 1, 1, 8>}]} {
    %c0 = arith.constant 0 : index
    %c0_0 = arith.constant 0 : index
    %0 = vector.load %arg1[%c0, %c0_0] : memref<8x256xf32, #tpu.memory_space<vmem>>, vector<8x256xf32>
    %1 = vector.extract_strided_slice %0 {offsets = [0, 0], sizes = [8, 128], strides = [1, 1]} : vector<8x256xf32> to vector<8x128xf32>
    %2 = vector.extract_strided_slice %0 {offsets = [0, 128], sizes = [8, 128], strides = [1, 1]} : vector<8x256xf32> to vector<8x128xf32>
    %3 = arith.maximumf %1, %2 : vector<8x128xf32>
    %4 = tpu.transpose %3, [1, 0] : vector<8x128xf32> -> vector<128x8xf32>
    %cst = arith.constant dense<0xFF800000> : vector<8xf32>
    %5 = vector.multi_reduction <maximumf>, %4, %cst [0] : vector<128x8xf32> to vector<8xf32>
    %6 = vector.shape_cast %5 : vector<8xf32> to vector<1x8xf32>
    %7 = vector.shape_cast %6 : vector<1x8xf32> to vector<1x1x8xf32>
    %c0_1 = arith.constant 0 : index
    %c0_2 = arith.constant 0 : index
    %c0_3 = arith.constant 0 : index
    %8 = vector.load %arg2[%c0_1, %c0_2, %c0_3] : memref<1x1x8xf32, #tpu.memory_space<vmem>>, vector<1x1x8xf32>
    tpu.vector_store %arg2[%c0_1, %c0_2, %c0_3], %7 {strides = array<i32>} : memref<1x1x8xf32, #tpu.memory_space<vmem>>, vector<1x1x8xf32>,
    return
  }
  func.func @transform_0(%arg0: i32) -> (i32, i32) {
    %c0_i32 = arith.constant 0 : i32
    %c0_i32_0 = arith.constant 0 : i32
    return %arg0, %c0_i32 : i32, i32
  }
  func.func @transform_1(%arg0: i32) -> (i32, i32, i32) {
    %c0_i32 = arith.constant 0 : i32
    %c0_i32_0 = arith.constant 0 : i32
    %c0_i32_1 = arith.constant 0 : i32
    return %arg0, %c0_i32, %c0_i32_0 : i32, i32, i32
  }
}

</mosaic_0001>

<llo_original>
// kernel: tpu_custom_call.1
$region0: #{tpu_custom_call.1}
  #allocation0 [shape = 'u32[]', space=smem, size = 0x4, offset = 0x4, fixed_abs, tag = 'smem constant byte address 0x4 - core index']
  #allocation1 [shape = 'u32[144,128]{1,0:T(1,128)}', space=vmem, size = 0x12000, scoped, tag = 'internal scratch']
  %s0 = inlined_call_operand.hbm [shape: f32[8,256], index: 0, kind: input, shape index: {}]
  %s1 = inlined_call_operand.hbm [shape: f32[1,1,8], index: 1, kind: output, shape index: {}]
  %s2 = sld [smem:[#allocation0]]
  $region18: #{tpu_custom_call.1} parent=0
    _
  %s4 = ssub.s32 1, %s2
  %s5 = scalar_select 0, %s4, %s2
  $region1: #{tpu_custom_call.1} parent=0
    #allocation2 [shape = 'u8[8192]{0}', space=vmem, size = 0x2000, scoped, tag = 'input window, operand 0, single buffered']
    #allocation3 [shape = 's32[1]{0}', space=sflag, size = 0x4, scoped, tag = 'scoped memory for tpu_custom_call.1']
    #allocation4 [shape = 's32[1]{0}', space=sflag, size = 0x4, scoped, tag = 'scoped memory for tpu_custom_call.1']
    #allocation5 [shape = 'u8[512]{0}', space=vmem, size = 0x400, scoped, tag = 'output window, operand 0, single buffered']
    %6 = vsyncpa [#allocation3], 0
    %7 = vsyncpa [#allocation4], 0
    // Predicated region
    $region2: #{tpu_custom_call.1} parent=1 // pred_check
      _
    $region3: #{tpu_custom_call.1} parent=1 // pred_check_branch
      %9 = sbr.rel (0) target = $region5
    $region4: #{tpu_custom_call.1} parent=1 // pred_region
      %s11 = ssub.s32 256, 256
      %12 = vsyncadd [#allocation3], %s11
      %s14 = sshll.u32 [#allocation2], 4
      %s15 = int_to_ptr.vmem [resolvable:$true] %s14
      %17 = dma.hbm_to_vmem [thread:$0]  %s0, 256, %s15, [#allocation3]
    $region5: #{tpu_custom_call.1} parent=1 // pred_fallthru
      _
    // Predicated region
    $region6: #{tpu_custom_call.1} parent=1 // pred_check
      _
    $region7: #{tpu_custom_call.1} parent=1 // pred_check_branch
      %19 = sbr.rel (0) target = $region9
    $region8: #{tpu_custom_call.1} parent=1 // pred_region
      %20 = dma.done [#allocation3], 256
    $region9: #{tpu_custom_call.1} parent=1 // pred_fallthru
      _
    %v21 = vld [vmem:[#allocation2] sm:$0xff]
    %v22 = vld [vmem:[#allocation2 + $0x8] sm:$0xff]
    %v23 = vmax.f32 %v21, %v22
    %24 = vxpose.xlu0.b32.start [1/16] %v23, 128
    %25 = vxpose.xlu0.b32.cont [2/16] 0.0, 128
    %26 = vxpose.xlu0.b32.cont [3/16] 0.0, 128
    %27 = vxpose.xlu0.b32.cont [4/16] 0.0, 128
    %28 = vxpose.xlu0.b32.cont [5/16] 0.0, 128
    %29 = vxpose.xlu0.b32.cont [6/16] 0.0, 128
    %30 = vxpose.xlu0.b32.cont [7/16] 0.0, 128
    %31 = vxpose.xlu0.b32.cont [8/16] 0.0, 128
    %32 = vxpose.xlu0.b32.cont [9/16] 0.0, 128
    %33 = vxpose.xlu0.b32.cont [10/16] 0.0, 128
    %34 = vxpose.xlu0.b32.cont [11/16] 0.0, 128
    %35 = vxpose.xlu0.b32.cont [12/16] 0.0, 128
    %36 = vxpose.xlu0.b32.cont [13/16] 0.0, 128
    %37 = vxpose.xlu0.b32.cont [14/16] 0.0, 128
    %38 = vxpose.xlu0.b32.cont [15/16] 0.0, 128
    %39 = vxpose.xlu0.b32.end [16/16] 0.0, 128
    %v40 = vpop.trf.xlu0
    %v41 = vpop.trf.xlu0
    %v42 = vpop.trf.xlu0
    %v43 = vpop.trf.xlu0
    %v44 = vpop.trf.xlu0
    %v45 = vpop.trf.xlu0
    %v46 = vpop.trf.xlu0
    %v47 = vpop.trf.xlu0
    %v48 = vpop.trf.xlu0
    %v49 = vpop.trf.xlu0
    %v50 = vpop.trf.xlu0
    %v51 = vpop.trf.xlu0
    %v52 = vpop.trf.xlu0
    %v53 = vpop.trf.xlu0
    %v54 = vpop.trf.xlu0
    %v55 = vpop.trf.xlu0
    %vm56 = vcmask 64512
    %v57 = vsel %vm56, %v40, -inf
    %v58 = vsel %vm56, %v41, -inf
    %v59 = vsel %vm56, %v42, -inf
    %v60 = vsel %vm56, %v43, -inf
    %v61 = vsel %vm56, %v44, -inf
    %v62 = vmax.f32 %v57, %v61
    %v63 = vsel %vm56, %v45, -inf
    %v64 = vmax.f32 %v58, %v63
    %v65 = vsel %vm56, %v46, -inf
    %v66 = vmax.f32 %v59, %v65
    %v67 = vsel %vm56, %v47, -inf
    %v68 = vmax.f32 %v60, %v67
    %v69 = vsel %vm56, %v48, -inf
    %v70 = vmax.f32 %v62, %v69
    %v71 = vsel %vm56, %v49, -inf
    %v72 = vmax.f32 %v64, %v71
    %v73 = vsel %vm56, %v50, -inf
    %v74 = vmax.f32 %v66, %v73
    %v75 = vsel %vm56, %v51, -inf
    %v76 = vmax.f32 %v68, %v75
    %v77 = vsel %vm56, %v52, -inf
    %v78 = vmax.f32 %v70, %v77
    %v79 = vsel %vm56, %v53, -inf
    %v80 = vmax.f32 %v72, %v79
    %v81 = vsel %vm56, %v54, -inf
    %v82 = vmax.f32 %v74, %v81
    %v83 = vsel %vm56, %v55, -inf
    %v84 = vmax.f32 %v76, %v83
    %v85 = vmax.f32 %v78, %v80
    %v86 = vmax.f32 %v82, %v84
    %v87 = vmax.f32 %v85, %v86
    %v88 = vrot.slane %v87, 4
    %v89 = vmax.f32 %v87, %v88
    %v90 = vrot.slane %v89, 2
    %v91 = vmax.f32 %v89, %v90
    %v92 = vrot.slane %v91, 1
    %v93 = vmax.f32 %v91, %v92
    %vm94 = vcmask 57344
    %95 = vst.msk [vmem:[#allocation5] sm:$0x1] %vm94, %v93
    // Predicated region
    $region10: #{tpu_custom_call.1} parent=1 // pred_check
      _
    $region11: #{tpu_custom_call.1} parent=1 // pred_check_branch
      %97 = sbr.rel (0) target = $region13
    $region12: #{tpu_custom_call.1} parent=1 // pred_region
      %s99 = ssub.s32 16, 16
      %100 = vsyncadd [#allocation4], %s99
      %s102 = sshll.u32 [#allocation5], 4
      %s103 = int_to_ptr.vmem [resolvable:$true] %s102
      %105 = dma.vmem_to_hbm [thread:$0]  %s103, 16, %s1, [#allocation4]
    $region13: #{tpu_custom_call.1} parent=1 // pred_fallthru
      _
    // Predicated region
    $region14: #{tpu_custom_call.1} parent=1 // pred_check
      _
    $region15: #{tpu_custom_call.1} parent=1 // pred_check_branch
      %107 = sbr.rel (0) target = $region17
    $region16: #{tpu_custom_call.1} parent=1 // pred_region
      %108 = dma.done [#allocation4], 16
    $region17: #{tpu_custom_call.1} parent=1 // pred_fallthru
      _
    %109 = vsyncpa [#allocation3], 1
    %110 = vsyncpa [#allocation4], 1

</llo_original>
